<compile_context>
chip_gen: v7x
topology: tpu7x:2x2x1
jax: 0.10.0
libtpu: 0.0.40
codegen_flags: <defaults>
</compile_context>

<pallas_src>
import functools

import jax
import jax.numpy as jnp
from jax import lax
from jax.experimental import pallas as pl
from jax.experimental.pallas import tpu as pltpu


def _round_up(x, m):
    return ((x + m - 1) // m) * m


# --------------------------------------------------------------------------
# Prologue: row-wise center + normalize (emits bf16 rows ready for the MXU).
# --------------------------------------------------------------------------
def _rownorm_kernel(x_ref, out_ref, *, true_d):
    x = x_ref[...].astype(jnp.float32)                       # (TR, Dp)
    lane = lax.broadcasted_iota(jnp.int32, x.shape, 1)
    valid = lane < true_d                                    # mask padded lanes
    # mean over the TRUE feature dim (padded lanes are zero so sum is exact)
    mean = jnp.sum(x, axis=1, keepdims=True) * (1.0 / float(true_d))
    xc = jnp.where(valid, x - mean, 0.0)                     # zero padded lanes AFTER centering
    lxx = jnp.sum(xc * xc, axis=1, keepdims=True)            # row sum of squares
    inv = lax.rsqrt(lxx)                                     # EUP slot, not VALU
    out_ref[...] = (xc * inv).astype(out_ref.dtype)          # bf16 normalized rows


def _row_normalize(x_pad, true_d, tile_rows):
    n_pad, d_pad = x_pad.shape
    kernel = functools.partial(_rownorm_kernel, true_d=true_d)
    return pl.pallas_call(
        kernel,
        out_shape=jax.ShapeDtypeStruct((n_pad, d_pad), jnp.bfloat16),
        grid=(n_pad // tile_rows,),
        in_specs=[pl.BlockSpec((tile_rows, d_pad), lambda i: (i, 0))],
        out_specs=pl.BlockSpec((tile_rows, d_pad), lambda i: (i, 0)),
        compiler_params=pltpu.CompilerParams(
            dimension_semantics=("parallel",)),
    )(x_pad)


# --------------------------------------------------------------------------
# Main kernel: corr tile = xn @ yn^T (1-1 contraction, no transpose), then
# sigmoid(gamma * corr).  gamma comes from SMEM.
# --------------------------------------------------------------------------
def _corr_sigmoid_kernel(gamma_ref, xn_ref, yn_ref, out_ref):
    gamma = gamma_ref[0, 0]
    corr = lax.dot_general(
        xn_ref[...], yn_ref[...],
        dimension_numbers=(((1,), (1,)), ((), ())),
        preferred_element_type=jnp.float32)                  # (TM, TN) f32 accum
    out_ref[...] = jax.nn.sigmoid(gamma * corr)


def gdecoder_forward(cell_emb, drug_emb, gamma):
    """sigmoid(gamma * pearson_corr(cell_i, drug_j)) -> (N_cell, N_drug) f32."""
    n_cell, d1 = cell_emb.shape
    n_drug, d2 = drug_emb.shape
    assert d1 == d2, "feature dims must match"
    d = d1

    # Tile sizes: lane-dense output (TN multiple of 128), sublane-friendly TM.
    tm = 256 if n_cell >= 256 else _round_up(n_cell, 16)
    tn = 512 if n_drug >= 512 else _round_up(n_drug, 128)
    nc_pad = _round_up(n_cell, tm)
    nd_pad = _round_up(n_drug, tn)
    d_pad = _round_up(d, 128)

    cell_pad = jnp.pad(cell_emb.astype(jnp.float32),
                       ((0, nc_pad - n_cell), (0, d_pad - d)))
    drug_pad = jnp.pad(drug_emb.astype(jnp.float32),
                       ((0, nd_pad - n_drug), (0, d_pad - d)))

    # Normalize each side once (O((Nc+Nd)*D) instead of per output tile).
    xn = _row_normalize(cell_pad, d, tm)                     # (nc_pad, d_pad) bf16
    yn = _row_normalize(drug_pad, d, tn)                     # (nd_pad, d_pad) bf16

    gamma_arr = jnp.asarray(gamma, dtype=jnp.float32).reshape(1, 1)

    out_pad = pl.pallas_call(
        _corr_sigmoid_kernel,
        out_shape=jax.ShapeDtypeStruct((nc_pad, nd_pad), jnp.float32),
        grid=(nc_pad // tm, nd_pad // tn),
        in_specs=[
            pl.BlockSpec(memory_space=pltpu.MemorySpace.SMEM),   # gamma scalar
            pl.BlockSpec((tm, d_pad), lambda i, j: (i, 0)),      # cell tile
            pl.BlockSpec((tn, d_pad), lambda i, j: (j, 0)),      # drug tile
        ],
        out_specs=pl.BlockSpec((tm, tn), lambda i, j: (i, j)),
        compiler_params=pltpu.CompilerParams(
            dimension_semantics=("parallel", "parallel"),
            vmem_limit_bytes=32 * 1024 * 1024),
    )(gamma_arr, xn, yn)

    # Drop padded rows/cols (padded entries are never mixed into valid ones:
    # the contraction only runs over the feature dim, whose padded lanes are 0).
    return out_pad[:n_cell, :n_drug]


# --------------------------------------------------------------------------
# Pure-JAX reference (f32) mirroring torch_corr_x_y + scale_sigmoid.
# --------------------------------------------------------------------------
def _reference(cell_emb, drug_emb, gamma):
    xc = cell_emb - jnp.mean(cell_emb, axis=1, keepdims=True)
    yc = drug_emb - jnp.mean(drug_emb, axis=1, keepdims=True)
    lxy = xc @ yc.T
    lxx = jnp.sum(xc * xc, axis=1, keepdims=True)
    lyy = jnp.sum(yc * yc, axis=1, keepdims=True)
    corr = lxy / (jnp.sqrt(lxx) * jnp.sqrt(lyy).T)
    return jax.nn.sigmoid(gamma * corr)


if __name__ == "__main__":
    key = jax.random.PRNGKey(0)
    k1, k2 = jax.random.split(key)

    n_cell, n_drug, hidden = 8, 16, 32
    gamma = 2.0  # GDecoder's only parameter (scalar hyperparameter)

    cell_emb = jax.random.normal(k1, (n_cell, hidden), dtype=jnp.float32)
    drug_emb = jax.random.normal(k2, (n_drug, hidden), dtype=jnp.float32)

    out = gdecoder_forward(cell_emb, drug_emb, gamma)
    out = jax.block_until_ready(out)

    ref = _reference(cell_emb, drug_emb, gamma)
    assert out.shape == (n_cell, n_drug)
    # bf16 MXU contraction (f32 accumulation) -> looser tolerance than pure f32.
    assert jnp.allclose(out, ref, atol=2e-2, rtol=0.0), "mismatch vs reference"

    print("KERNEL_OK")
</pallas_src>

<mosaic_0001>
module attributes {stable_mosaic.version = 11 : i64} {
  func.func @_rownorm_kernel(%arg0: i32, %arg1: memref<16x128xf32, #tpu.memory_space<vmem>>, %arg2: memref<16x128xbf16, #tpu.memory_space<vmem>>) attributes {dimension_semantics = [#tpu.dimension_semantics<parallel>], iteration_bounds = array<i64: 1>, scalar_prefetch = 0 : i64, scratch_operands = 0 : i64, tpu.core_type = #tpu.core_type<tc>, window_params = [{transform_indices = @transform_0, window_bounds = array<i64: 16, 128>}, {transform_indices = @transform_1, window_bounds = array<i64: 16, 128>}]} {
    %c0 = arith.constant 0 : index
    %c0_0 = arith.constant 0 : index
    %0 = vector.load %arg1[%c0, %c0_0] : memref<16x128xf32, #tpu.memory_space<vmem>>, vector<16x128xf32>
    %1 = tpu.iota {dimensions = array<i32: 1>} : vector<16x128xi32>
    %c32_i32 = arith.constant 32 : i32
    %2 = vector.broadcast %c32_i32 : i32 to vector<16x128xi32>
    %3 = arith.cmpi slt, %1, %2 : vector<16x128xi32>
    %cst = arith.constant dense<0.000000e+00> : vector<16xf32>
    %4 = vector.multi_reduction <add>, %0, %cst [1] : vector<16x128xf32> to vector<16xf32>
    %5 = vector.shape_cast %4 : vector<16xf32> to vector<16x1xf32>
    %cst_1 = arith.constant 3.125000e-02 : f32
    %6 = vector.broadcast %cst_1 : f32 to vector<16x1xf32>
    %7 = arith.mulf %5, %6 : vector<16x1xf32>
    %8 = vector.broadcast %7 : vector<16x1xf32> to vector<16x128xf32>
    %9 = arith.subf %0, %8 : vector<16x128xf32>
    %cst_2 = arith.constant 0.000000e+00 : f32
    %10 = vector.broadcast %cst_2 : f32 to vector<16x128xf32>
    %11 = arith.select %3, %9, %10 : vector<16x128xi1>, vector<16x128xf32>
    %12 = arith.mulf %11, %11 : vector<16x128xf32>
    %cst_3 = arith.constant dense<0.000000e+00> : vector<16xf32>
    %13 = vector.multi_reduction <add>, %12, %cst_3 [1] : vector<16x128xf32> to vector<16xf32>
    %14 = vector.shape_cast %13 : vector<16xf32> to vector<16x1xf32>
    %15 = math.rsqrt %14 : vector<16x1xf32>
    %16 = vector.broadcast %15 : vector<16x1xf32> to vector<16x128xf32>
    %17 = arith.mulf %11, %16 : vector<16x128xf32>
    %18 = arith.truncf %17 : vector<16x128xf32> to vector<16x128xbf16>
    %c0_4 = arith.constant 0 : index
    %c0_5 = arith.constant 0 : index
    %19 = vector.load %arg2[%c0_4, %c0_5] : memref<16x128xbf16, #tpu.memory_space<vmem>>, vector<16x128xbf16>
    tpu.vector_store %arg2[%c0_4, %c0_5], %18 {strides = array<i32>} : memref<16x128xbf16, #tpu.memory_space<vmem>>, vector<16x128xbf16>,
    return
  }
  func.func @transform_0(%arg0: i32) -> (i32, i32) {
    %c0_i32 = arith.constant 0 : i32
    %c0_i32_0 = arith.constant 0 : i32
    return %arg0, %c0_i32 : i32, i32
  }
  func.func @transform_1(%arg0: i32) -> (i32, i32) {
    %c0_i32 = arith.constant 0 : i32
    %c0_i32_0 = arith.constant 0 : i32
    return %arg0, %c0_i32 : i32, i32
  }
}

</mosaic_0001>

<llo_original>
// kernel: tpu_custom_call.1
$region0: #{tpu_custom_call.1}
  #allocation0 [shape = 'u32[]', space=smem, size = 0x4, offset = 0x4, fixed_abs, tag = 'smem constant byte address 0x4 - core index']
  #allocation1 [shape = 'u32[144,128]{1,0:T(1,128)}', space=vmem, size = 0x12000, scoped, tag = 'internal scratch']
  %s0 = inlined_call_operand.hbm [shape: f32[16,128], index: 0, kind: input, shape index: {}]
  %s1 = inlined_call_operand.hbm [shape: bf16[16,128], index: 1, kind: output, shape index: {}]
  %s2 = sld [smem:[#allocation0]]
  $region18: #{tpu_custom_call.1} parent=0
    _
  %s4 = ssub.s32 1, %s2
  %s5 = scalar_select 0, %s4, %s2
  $region1: #{tpu_custom_call.1} parent=0
    #allocation2 [shape = 'u8[8192]{0}', space=vmem, size = 0x2000, scoped, tag = 'input window, operand 0, single buffered']
    #allocation3 [shape = 's32[1]{0}', space=sflag, size = 0x4, scoped, tag = 'scoped memory for tpu_custom_call.1']
    #allocation4 [shape = 's32[1]{0}', space=sflag, size = 0x4, scoped, tag = 'scoped memory for tpu_custom_call.1']
    #allocation5 [shape = 'u8[4096]{0}', space=vmem, size = 0x1000, scoped, tag = 'output window, operand 0, single buffered']
    %6 = vsyncpa [#allocation3], 0
    %7 = vsyncpa [#allocation4], 0
    // Predicated region
    $region2: #{tpu_custom_call.1} parent=1 // pred_check
      _
    $region3: #{tpu_custom_call.1} parent=1 // pred_check_branch
      %9 = sbr.rel (0) target = $region5
    $region4: #{tpu_custom_call.1} parent=1 // pred_region
      %s11 = ssub.s32 256, 256
      %12 = vsyncadd [#allocation3], %s11
      %s13 = sshll.u32 [#allocation2], 4
      %s14 = int_to_ptr.vmem [resolvable:$true] %s13
      %19 = dma.hbm_to_vmem [thread:$0]  %s0, 256, %s14, [#allocation3], 128, 128, 8
    $region5: #{tpu_custom_call.1} parent=1 // pred_fallthru
      _
    // Predicated region
    $region6: #{tpu_custom_call.1} parent=1 // pred_check
      _
    $region7: #{tpu_custom_call.1} parent=1 // pred_check_branch
      %21 = sbr.rel (0) target = $region9
    $region8: #{tpu_custom_call.1} parent=1 // pred_region
      %22 = dma.done [#allocation3], 256
    $region9: #{tpu_custom_call.1} parent=1 // pred_fallthru
      _
    %v23 = vld [vmem:[#allocation2] sm:$0xff]
    %v24 = vld [vmem:[#allocation2 + $0x8] sm:$0xff]
    %v25 = vlaneseq
    %v26 = vand.u32 %v25, 127
    %vm27 = vcmp.lt.s32.totalorder %v26, 32
    %28 = vadd.xlane.f32.xlu0 %v23
    %v29 = vpop.xlane.xlu0 %28
    %30 = vadd.xlane.f32.xlu0 %v24
    %v31 = vpop.xlane.xlu0 %30
    %v32 = vmul.f32 %v29, 0.03125
    %v33 = vmul.f32 %v31, 0.03125
    %v34 = vsub.f32 %v23, %v32
    %v35 = vsub.f32 %v24, %v33
    %v36 = vsel %vm27, %v34, 0.0
    %v37 = vsel %vm27, %v35, 0.0
    %v38 = vmul.f32 %v36, %v36
    %v39 = vmul.f32 %v37, %v37
    %40 = vadd.xlane.f32.xlu0 %v38
    %v41 = vpop.xlane.xlu0 %40
    %42 = vadd.xlane.f32.xlu0 %v39
    %v43 = vpop.xlane.xlu0 %42
    %v44 = vrsqrt.pop %v41
    %v45 = vrsqrt.pop %v43
    %v46 = vmul.f32 %v36, %v44
    %v47 = vmul.f32 %v37, %v45
    %v48 = vpack.c.bf16 %v47, %v46
    %v50 = vunpack.c.l.b16 %v48
    %v51 = vunpack.c.h.b16 %v48
    %v52 = vpack.c.b16 %v50, %v50
    %v53 = vpack.c.b16 %v51, %v51
    %56 = vst [vmem:[#allocation5] sm:$0xf] %v52
    %57 = vst [vmem:[#allocation5 + $0x4] sm:$0xf] %v53
    // Predicated region
    $region10: #{tpu_custom_call.1} parent=1 // pred_check
      _
    $region11: #{tpu_custom_call.1} parent=1 // pred_check_branch
      %59 = sbr.rel (0) target = $region13
    $region12: #{tpu_custom_call.1} parent=1 // pred_region
      %s61 = ssub.s32 128, 128
      %62 = vsyncadd [#allocation4], %s61
      %s63 = sshll.u32 [#allocation5], 4
      %s64 = int_to_ptr.vmem [resolvable:$true] %s63
      %69 = dma.vmem_to_hbm [thread:$0]  %s64, 128, %s1, [#allocation4], 64, 64, 4
    $region13: #{tpu_custom_call.1} parent=1 // pred_fallthru
      _
    // Predicated region
    $region14: #{tpu_custom_call.1} parent=1 // pred_check
      _
    $region15: #{tpu_custom_call.1} parent=1 // pred_check_branch
      %71 = sbr.rel (0) target = $region17
    $region16: #{tpu_custom_call.1} parent=1 // pred_region
      %72 = dma.done [#allocation4], 128
    $region17: #{tpu_custom_call.1} parent=1 // pred_fallthru
      _
    %73 = vsyncpa [#allocation3], 1
    %74 = vsyncpa [#allocation4], 1

</llo_original>
